<compile_context>
chip_gen: v5e
topology: v5e:2x2
jax: 0.10.0
libtpu: 0.0.40
codegen_flags: <defaults>
</compile_context>

<pallas_src>
import functools

import jax
import jax.numpy as jnp
from jax import lax
from jax.experimental import pallas as pl
from jax.experimental.pallas import tpu as pltpu

LANE = 128
SUBLANE = 8


def _round_up(x, m):
    return ((x + m - 1) // m) * m


def _cdiv(a, b):
    return -(-a // b)


def _elem_sq(yo, yp, to, tp, eps):
    """Per-element (y_obs - (y_pred + (t1 - t0) * eps)) ** 2 in f32."""
    tp = (tp + jnp.float32(0.01)) * jnp.float32(1.0 / 1.02)
    # t1 - t0 = t_obs/t_pred - (1 - t_obs)/(1 - t_pred)
    #         = (t_obs - t_pred) / (t_pred * (1 - t_pred))
    # reciprocal + multiply moves the long-latency op onto the (idle) EUP slot.
    t_diff = (to - tp) * pl.reciprocal(tp * (jnp.float32(1.0) - tp), approx=False)
    d = yo - (yp + t_diff * eps)
    return d * d


def _fold(x, tr):
    # (tr, 128) -> (8, 128): vreg-aligned partial reduction (pure VPU adds).
    return x.reshape(tr // SUBLANE, SUBLANE, LANE).sum(axis=0)


def _accumulate(sq, out_ref, *, tr, k_steps, mask_block, mask_rem):
    """Accumulate the folded per-tile sums into the (8,128) resident block."""
    p = pl.program_id(0)
    k = pl.program_id(1)
    gblock = p * k_steps + k

    @pl.when(k == 0)
    def _init():
        out_ref[...] = jnp.zeros_like(out_ref)

    @pl.when(gblock < mask_block)
    def _dense():
        out_ref[...] += _fold(sq, tr)

    @pl.when(gblock == mask_block)
    def _tail():
        # Only this block contains padded / out-of-range lanes.  Tile-relative
        # offsets keep everything well inside int32 range.
        row = lax.broadcasted_iota(jnp.int32, (tr, LANE), 0)
        lane = lax.broadcasted_iota(jnp.int32, (tr, LANE), 1)
        local = row * LANE + lane
        masked = jnp.where(local < mask_rem, sq, jnp.float32(0.0))
        out_ref[...] += _fold(masked, tr)
    # gblock > mask_block: phantom block (parallel-chunk rounding) -> contributes 0.


def _kernel_scalar_eps(tr, k_steps, mask_block, mask_rem,
                       eps_ref, yo_ref, yp_ref, to_ref, tp_ref, out_ref):
    # epsilon is a single SMEM scalar (the common case: one trainable epsilon).
    sq = _elem_sq(yo_ref[...], yp_ref[...], to_ref[...], tp_ref[...], eps_ref[0])
    _accumulate(sq, out_ref, tr=tr, k_steps=k_steps,
                mask_block=mask_block, mask_rem=mask_rem)


def _kernel_slab_eps(tr, k_steps, mask_block, mask_rem,
                     yo_ref, yp_ref, to_ref, tp_ref, eps_ref, out_ref):
    # fallback: per-row epsilon as one extra dense VMEM stream.
    sq = _elem_sq(yo_ref[...], yp_ref[...], to_ref[...], tp_ref[...], eps_ref[...])
    _accumulate(sq, out_ref, tr=tr, k_steps=k_steps,
                mask_block=mask_block, mask_rem=mask_rem)


def targeted_loss(y_obs, y_pred, t_obs, t_pred, epsilon, *,
                  tile_rows=2048, parallel_chunks=1):
    """Pallas equivalent of TargetedLoss.forward; returns a scalar float32."""
    y_obs = jnp.asarray(y_obs, jnp.float32)
    y_pred = jnp.asarray(y_pred, jnp.float32)
    t_obs = jnp.asarray(t_obs, jnp.float32)
    t_pred = jnp.asarray(t_pred, jnp.float32)
    epsilon = jnp.asarray(epsilon, jnp.float32)

    eps_col = epsilon.reshape(-1, 1)
    elem_shape = jnp.broadcast_shapes(y_obs.shape, y_pred.shape,
                                      t_obs.shape, t_pred.shape)
    scalar_eps = eps_col.size == 1
    full_shape = elem_shape if scalar_eps else jnp.broadcast_shapes(
        elem_shape, eps_col.shape)

    n = 1
    for d in full_shape:
        n *= int(d)

    # --- static tiling: dense (rows, 128) slabs, rows a multiple of 8 --------
    rows_full = _round_up(max(1, _cdiv(n, LANE)), SUBLANE)
    pad = rows_full * LANE - n                      # < 1024 elements of tail padding

    tr = min(_round_up(max(int(tile_rows), SUBLANE), SUBLANE), rows_full)
    n_blocks = _cdiv(rows_full, tr)                 # real row blocks
    par = max(1, min(int(parallel_chunks), n_blocks))
    k_steps = _cdiv(n_blocks, par)                  # grid = (par, k_steps)

    # Only one block ever needs masking: the one holding the element cut-off.
    last_rem = n - (n_blocks - 1) * tr * LANE
    if last_rem == tr * LANE:
        mask_block, mask_rem = n_blocks, 0          # every real block is full
    else:
        mask_block, mask_rem = n_blocks - 1, last_rem

    def to_slab(x):
        flat = jnp.broadcast_to(x, full_shape).reshape(-1)
        if pad:
            # Only the <1024-element tail; zero-padded lanes are masked in-kernel.
            flat = jnp.pad(flat, (0, pad))
        return flat.reshape(rows_full, LANE)        # zero-copy when pad == 0

    yo, yp, to, tp = (to_slab(a) for a in (y_obs, y_pred, t_obs, t_pred))

    last_real = n_blocks - 1

    def dense_map(p, k):
        # Clamp so phantom grid steps (par rounding) never DMA out of bounds.
        return (jnp.minimum(p * k_steps + k, last_real), 0)

    dense = pl.BlockSpec((tr, LANE), dense_map)
    out_spec = pl.BlockSpec((SUBLANE, LANE), lambda p, k: (p, 0))
    out_shape = jax.ShapeDtypeStruct((par * SUBLANE, LANE), jnp.float32)
    cparams = pltpu.CompilerParams(
        dimension_semantics=("parallel", "arbitrary"))
    # TODO(synk): on v7x, derive `parallel_chunks` from the core count and use
    # core-parallel sharding of the leading axis instead of this manual knob.

    if scalar_eps:
        kern = functools.partial(_kernel_scalar_eps, tr, k_steps,
                                 mask_block, mask_rem)
        partial = pl.pallas_call(
            kern,
            out_shape=out_shape,
            grid=(par, k_steps),
            in_specs=[pl.BlockSpec(memory_space=pltpu.MemorySpace.SMEM),
                      dense, dense, dense, dense],
            out_specs=out_spec,
            compiler_params=cparams,
        )(epsilon.reshape(-1), yo, yp, to, tp)
    else:
        ev = to_slab(eps_col)
        kern = functools.partial(_kernel_slab_eps, tr, k_steps,
                                 mask_block, mask_rem)
        partial = pl.pallas_call(
            kern,
            out_shape=out_shape,
            grid=(par, k_steps),
            in_specs=[dense, dense, dense, dense, dense],
            out_specs=out_spec,
            compiler_params=cparams,
        )(yo, yp, to, tp, ev)

    # tiny final cross-lane reduce + mean divide outside the kernel
    return jnp.sum(partial) / jnp.float32(n)


def _reference(y_obs, y_pred, t_obs, t_pred, epsilon):
    t_pred = (t_pred + 0.01) / 1.02
    t1 = t_obs / t_pred
    t0 = (1.0 - t_obs) / (1.0 - t_pred)
    t = (t1 - t0) * epsilon.reshape(-1, 1)
    return jnp.mean((y_obs - (y_pred + t)) ** 2)


def _make(key, n):
    ks = jax.random.split(key, 5)
    y_obs = jax.random.normal(ks[0], (n, 1), jnp.float32)
    y_pred = jax.random.normal(ks[1], (n, 1), jnp.float32)
    t_obs = (jax.random.uniform(ks[2], (n, 1)) > 0.5).astype(jnp.float32)
    t_pred = jax.random.uniform(ks[3], (n, 1), jnp.float32, minval=0.05, maxval=0.95)
    return y_obs, y_pred, t_obs, t_pred, ks[4]


if __name__ == "__main__":
    key = jax.random.PRNGKey(0)

    # 1) small batch, scalar epsilon (SMEM fast path), single masked block.
    yo, yp, to, tp, k = _make(key, 8)
    eps = jax.random.normal(k, (1,), jnp.float32) * 0.05
    out = targeted_loss(yo, yp, to, tp, eps)
    jax.block_until_ready(out)
    ref = _reference(yo, yp, to, tp, eps)
    assert jnp.allclose(out, ref, rtol=1e-4, atol=1e-6), (out, ref)

    # 2) per-row epsilon + multi-block k reduction with a masked tail block.
    yo, yp, to, tp, k = _make(jax.random.PRNGKey(1), 3000)
    eps = jax.random.normal(k, (3000,), jnp.float32) * 0.05
    out = targeted_loss(yo, yp, to, tp, eps, tile_rows=8)
    jax.block_until_ready(out)
    ref = _reference(yo, yp, to, tp, eps)
    assert jnp.allclose(out, ref, rtol=1e-4, atol=1e-6), (out, ref)

    # 3) element count aligned to 8*128 (zero-copy slabs, no masked block),
    #    two parallel chunks.
    yo, yp, to, tp, k = _make(jax.random.PRNGKey(2), 2048)
    eps = jax.random.normal(k, (1,), jnp.float32) * 0.05
    out = targeted_loss(yo, yp, to, tp, eps, tile_rows=8, parallel_chunks=2)
    jax.block_until_ready(out)
    ref = _reference(yo, yp, to, tp, eps)
    assert jnp.allclose(out, ref, rtol=1e-4, atol=1e-6), (out, ref)

    # 4) overhanging last block + phantom grid step from parallel rounding.
    yo, yp, to, tp, k = _make(jax.random.PRNGKey(3), 3000)
    eps = jax.random.normal(k, (1,), jnp.float32) * 0.05
    out = targeted_loss(yo, yp, to, tp, eps, tile_rows=16, parallel_chunks=2)
    jax.block_until_ready(out)
    ref = _reference(yo, yp, to, tp, eps)
    assert jnp.allclose(out, ref, rtol=1e-4, atol=1e-6), (out, ref)

    print("KERNEL_OK")
</pallas_src>

<mosaic_0001>
module attributes {stable_mosaic.version = 11 : i64} {
  func.func @_kernel_scalar_eps(%arg0: i32, %arg1: i32, %arg2: memref<1xf32, #tpu.memory_space<smem>>, %arg3: memref<8x128xf32, #tpu.memory_space<vmem>>, %arg4: memref<8x128xf32, #tpu.memory_space<vmem>>, %arg5: memref<8x128xf32, #tpu.memory_space<vmem>>, %arg6: memref<8x128xf32, #tpu.memory_space<vmem>>, %arg7: memref<8x128xf32, #tpu.memory_space<vmem>>) attributes {dimension_semantics = [#tpu.dimension_semantics<parallel>, #tpu.dimension_semantics<arbitrary>], iteration_bounds = array<i64: 1, 1>, scalar_prefetch = 0 : i64, scratch_operands = 0 : i64, tpu.core_type = #tpu.core_type<tc>, window_params = [{transform_indices = @transform_0, window_bounds = array<i64: 1>}, {transform_indices = @transform_1, window_bounds = array<i64: 8, 128>}, {transform_indices = @transform_2, window_bounds = array<i64: 8, 128>}, {transform_indices = @transform_3, window_bounds = array<i64: 8, 128>}, {transform_indices = @transform_4, window_bounds = array<i64: 8, 128>}, {transform_indices = @transform_5, window_bounds = array<i64: 8, 128>}]} {
    %c0 = arith.constant 0 : index
    %c0_0 = arith.constant 0 : index
    %0 = vector.load %arg3[%c0, %c0_0] : memref<8x128xf32, #tpu.memory_space<vmem>>, vector<8x128xf32>
    %c0_1 = arith.constant 0 : index
    %c0_2 = arith.constant 0 : index
    %1 = vector.load %arg4[%c0_1, %c0_2] : memref<8x128xf32, #tpu.memory_space<vmem>>, vector<8x128xf32>
    %c0_3 = arith.constant 0 : index
    %c0_4 = arith.constant 0 : index
    %2 = vector.load %arg5[%c0_3, %c0_4] : memref<8x128xf32, #tpu.memory_space<vmem>>, vector<8x128xf32>
    %c0_5 = arith.constant 0 : index
    %c0_6 = arith.constant 0 : index
    %3 = vector.load %arg6[%c0_5, %c0_6] : memref<8x128xf32, #tpu.memory_space<vmem>>, vector<8x128xf32>
    %c0_7 = arith.constant 0 : index
    %4 = memref.load %arg2[%c0_7] : memref<1xf32, #tpu.memory_space<smem>>
    %cst = arith.constant 0.00999999977 : f32
    %5 = vector.broadcast %cst : f32 to vector<8x128xf32>
    %6 = arith.addf %3, %5 : vector<8x128xf32>
    %cst_8 = arith.constant 0.980392158 : f32
    %7 = vector.broadcast %cst_8 : f32 to vector<8x128xf32>
    %8 = arith.mulf %6, %7 : vector<8x128xf32>
    %9 = arith.subf %2, %8 : vector<8x128xf32>
    %cst_9 = arith.constant 1.000000e+00 : f32
    %10 = vector.broadcast %cst_9 : f32 to vector<8x128xf32>
    %11 = arith.subf %10, %8 : vector<8x128xf32>
    %12 = arith.mulf %8, %11 : vector<8x128xf32>
    %13 = tpu.reciprocal %12 : vector<8x128xf32> -> vector<8x128xf32>
    %14 = arith.mulf %9, %13 : vector<8x128xf32>
    %15 = vector.broadcast %4 : f32 to vector<8x128xf32>
    %16 = arith.mulf %14, %15 : vector<8x128xf32>
    %17 = arith.addf %1, %16 : vector<8x128xf32>
    %18 = arith.subf %0, %17 : vector<8x128xf32>
    %19 = arith.mulf %18, %18 : vector<8x128xf32>
    %c1_i32 = arith.constant 1 : i32
    %20 = arith.muli %arg0, %c1_i32 : i32
    %21 = arith.addi %20, %arg1 : i32
    %c0_i32 = arith.constant 0 : i32
    %22 = arith.cmpi eq, %arg1, %c0_i32 : i32
    %23 = arith.extui %22 : i1 to i32
    %c0_i32_10 = arith.constant 0 : i32
    %24 = arith.cmpi ne, %23, %c0_i32_10 : i32
    scf.if %24 {
      %cst_15 = arith.constant 0.000000e+00 : f32
      %31 = vector.broadcast %cst_15 : f32 to vector<8x128xf32>
      %c0_16 = arith.constant 0 : index
      %c0_17 = arith.constant 0 : index
      %32 = vector.load %arg7[%c0_16, %c0_17] : memref<8x128xf32, #tpu.memory_space<vmem>>, vector<8x128xf32>
      tpu.vector_store %arg7[%c0_16, %c0_17], %31 {strides = array<i32>} : memref<8x128xf32, #tpu.memory_space<vmem>>, vector<8x128xf32>,
    } else {
    }
    %c0_i32_11 = arith.constant 0 : i32
    %25 = arith.cmpi slt, %21, %c0_i32_11 : i32
    %26 = arith.extui %25 : i1 to i32
    %c0_i32_12 = arith.constant 0 : i32
    %27 = arith.cmpi ne, %26, %c0_i32_12 : i32
    scf.if %27 {
      %c0_15 = arith.constant 0 : index
      %c0_16 = arith.constant 0 : index
      %31 = vector.load %arg7[%c0_15, %c0_16] : memref<8x128xf32, #tpu.memory_space<vmem>>, vector<8x128xf32>
      %32 = vector.shape_cast %19 : vector<8x128xf32> to vector<1x8x128xf32>
      %cst_17 = arith.constant dense<0.000000e+00> : vector<8x128xf32>
      %33 = vector.multi_reduction <add>, %32, %cst_17 [0] : vector<1x8x128xf32> to vector<8x128xf32>
      %34 = arith.addf %31, %33 : vector<8x128xf32>
      %c0_18 = arith.constant 0 : index
      %c0_19 = arith.constant 0 : index
      %35 = vector.load %arg7[%c0_18, %c0_19] : memref<8x128xf32, #tpu.memory_space<vmem>>, vector<8x128xf32>
      tpu.vector_store %arg7[%c0_18, %c0_19], %34 {strides = array<i32>} : memref<8x128xf32, #tpu.memory_space<vmem>>, vector<8x128xf32>,
    } else {
    }
    %c0_i32_13 = arith.constant 0 : i32
    %28 = arith.cmpi eq, %21, %c0_i32_13 : i32
    %29 = arith.extui %28 : i1 to i32
    %c0_i32_14 = arith.constant 0 : i32
    %30 = arith.cmpi ne, %29, %c0_i32_14 : i32
    scf.if %30 {
      %31 = tpu.iota {dimensions = array<i32: 0>} : vector<8x128xi32>
      %32 = tpu.iota {dimensions = array<i32: 1>} : vector<8x128xi32>
      %c128_i32 = arith.constant 128 : i32
      %33 = vector.broadcast %c128_i32 : i32 to vector<8x128xi32>
      %34 = arith.muli %31, %33 : vector<8x128xi32>
      %35 = arith.addi %34, %32 : vector<8x128xi32>
      %c8_i32 = arith.constant 8 : i32
      %36 = vector.broadcast %c8_i32 : i32 to vector<8x128xi32>
      %37 = arith.cmpi slt, %35, %36 : vector<8x128xi32>
      %cst_15 = arith.constant 0.000000e+00 : f32
      %38 = vector.broadcast %cst_15 : f32 to vector<8x128xf32>
      %39 = arith.select %37, %19, %38 : vector<8x128xi1>, vector<8x128xf32>
      %c0_16 = arith.constant 0 : index
      %c0_17 = arith.constant 0 : index
      %40 = vector.load %arg7[%c0_16, %c0_17] : memref<8x128xf32, #tpu.memory_space<vmem>>, vector<8x128xf32>
      %41 = vector.shape_cast %39 : vector<8x128xf32> to vector<1x8x128xf32>
      %cst_18 = arith.constant dense<0.000000e+00> : vector<8x128xf32>
      %42 = vector.multi_reduction <add>, %41, %cst_18 [0] : vector<1x8x128xf32> to vector<8x128xf32>
      %43 = arith.addf %40, %42 : vector<8x128xf32>
      %c0_19 = arith.constant 0 : index
      %c0_20 = arith.constant 0 : index
      %44 = vector.load %arg7[%c0_19, %c0_20] : memref<8x128xf32, #tpu.memory_space<vmem>>, vector<8x128xf32>
      tpu.vector_store %arg7[%c0_19, %c0_20], %43 {strides = array<i32>} : memref<8x128xf32, #tpu.memory_space<vmem>>, vector<8x128xf32>,
    } else {
    }
    return
  }
  func.func @transform_0(%arg0: i32, %arg1: i32) -> i32 {
    %c0_i32 = arith.constant 0 : i32
    %c0_i32_0 = arith.constant 0 : i32
    return %c0_i32 : i32
  }
  func.func @transform_1(%arg0: i32, %arg1: i32) -> (i32, i32) {
    %c1_i32 = arith.constant 1 : i32
    %0 = arith.muli %arg0, %c1_i32 : i32
    %1 = arith.addi %0, %arg1 : i32
    %c0_i32 = arith.constant 0 : i32
    %2 = arith.minsi %1, %c0_i32 : i32
    %c0_i32_0 = arith.constant 0 : i32
    %c0_i32_1 = arith.constant 0 : i32
    return %2, %c0_i32_0 : i32, i32
  }
  func.func @transform_2(%arg0: i32, %arg1: i32) -> (i32, i32) {
    %c1_i32 = arith.constant 1 : i32
    %0 = arith.muli %arg0, %c1_i32 : i32
    %1 = arith.addi %0, %arg1 : i32
    %c0_i32 = arith.constant 0 : i32
    %2 = arith.minsi %1, %c0_i32 : i32
    %c0_i32_0 = arith.constant 0 : i32
    %c0_i32_1 = arith.constant 0 : i32
    return %2, %c0_i32_0 : i32, i32
  }
  func.func @transform_3(%arg0: i32, %arg1: i32) -> (i32, i32) {
    %c1_i32 = arith.constant 1 : i32
    %0 = arith.muli %arg0, %c1_i32 : i32
    %1 = arith.addi %0, %arg1 : i32
    %c0_i32 = arith.constant 0 : i32
    %2 = arith.minsi %1, %c0_i32 : i32
    %c0_i32_0 = arith.constant 0 : i32
    %c0_i32_1 = arith.constant 0 : i32
    return %2, %c0_i32_0 : i32, i32
  }
  func.func @transform_4(%arg0: i32, %arg1: i32) -> (i32, i32) {
    %c1_i32 = arith.constant 1 : i32
    %0 = arith.muli %arg0, %c1_i32 : i32
    %1 = arith.addi %0, %arg1 : i32
    %c0_i32 = arith.constant 0 : i32
    %2 = arith.minsi %1, %c0_i32 : i32
    %c0_i32_0 = arith.constant 0 : i32
    %c0_i32_1 = arith.constant 0 : i32
    return %2, %c0_i32_0 : i32, i32
  }
  func.func @transform_5(%arg0: i32, %arg1: i32) -> (i32, i32) {
    %c0_i32 = arith.constant 0 : i32
    %c0_i32_0 = arith.constant 0 : i32
    return %arg0, %c0_i32 : i32, i32
  }
}

</mosaic_0001>

<llo_original>
// kernel: tpu_custom_call.1
$region0: #{tpu_custom_call.1}
  #allocation0 [shape = 'u32[]', space=smem, size = 0x4, offset = 0x4, fixed_abs, tag = 'smem constant byte address 0x4 - core index']
  #allocation1 [shape = 'u32[72,128]{1,0:T(1,128)}', space=vmem, size = 0x9000, scoped, tag = 'internal scratch']
  #allocation2 [shape = 'f32[1]{0:T(128)S(6)}', space=smem, size = 0x200, scoped, tag = 'scoped memory for tpu_custom_call.1']
  %s0 = inlined_call_operand.<no memory space> [shape: f32[1], index: 0, kind: input, shape index: {}]
  %s1 = inlined_call_operand.hbm [shape: f32[8,128], index: 1, kind: input, shape index: {}]
  %s2 = inlined_call_operand.hbm [shape: f32[8,128], index: 2, kind: input, shape index: {}]
  %s3 = inlined_call_operand.hbm [shape: f32[8,128], index: 3, kind: input, shape index: {}]
  %s4 = inlined_call_operand.hbm [shape: f32[8,128], index: 4, kind: input, shape index: {}]
  %s5 = inlined_call_operand.hbm [shape: f32[8,128], index: 5, kind: output, shape index: {}]
  %s6 = sld [smem:[#allocation0]]
  $region58: #{tpu_custom_call.1} parent=0
    _
  %s8 = ssub.s32 1, %s6
  %s9 = scalar_select 0, %s8, %s6
  %10 = sst [smem:[#allocation2]] %s0
  $region1: #{tpu_custom_call.1} parent=0
    #allocation3 [shape = 'u8[4096]{0}', space=vmem, size = 0x1000, scoped, tag = 'input window, operand 1, single buffered']
    #allocation4 [shape = 's32[1]{0}', space=sflag, size = 0x4, scoped, tag = 'scoped memory for tpu_custom_call.1']
    #allocation5 [shape = 's32[1]{0}', space=sflag, size = 0x4, scoped, tag = 'scoped memory for tpu_custom_call.1']
    #allocation6 [shape = 'u8[4096]{0}', space=vmem, size = 0x1000, scoped, tag = 'input window, operand 2, single buffered']
    #allocation7 [shape = 's32[1]{0}', space=sflag, size = 0x4, scoped, tag = 'scoped memory for tpu_custom_call.1']
    #allocation8 [shape = 'u8[4096]{0}', space=vmem, size = 0x1000, scoped, tag = 'input window, operand 3, single buffered']
    #allocation9 [shape = 'u8[4096]{0}', space=vmem, size = 0x1000, scoped, tag = 'input window, operand 4, single buffered']
    #allocation10 [shape = 's32[1]{0}', space=sflag, size = 0x4, scoped, tag = 'scoped memory for tpu_custom_call.1']
    #allocation11 [shape = 'u8[4096]{0}', space=vmem, size = 0x1000, scoped, tag = 'output window, operand 0, single buffered']
    %11 = vsyncpa [#allocation4], 0
    %12 = vsyncpa [#allocation7], 0
    %13 = vsyncpa [#allocation10], 0
    %14 = vsyncpa [#allocation5], 0
    // Predicated region
    $region2: #{tpu_custom_call.1} parent=1 // pred_check
      _
    $region3: #{tpu_custom_call.1} parent=1 // pred_check_branch
      %16 = sbr.rel (0) target = $region5
    $region4: #{tpu_custom_call.1} parent=1 // pred_region
      _
    $region5: #{tpu_custom_call.1} parent=1 // pred_fallthru
      _
    // Predicated region
    $region6: #{tpu_custom_call.1} parent=1 // pred_check
      _
    $region7: #{tpu_custom_call.1} parent=1 // pred_check_branch
      %18 = sbr.rel (0) target = $region9
    $region8: #{tpu_custom_call.1} parent=1 // pred_region
      %s19 = sadd.s32 0, 0
      %p20 = scmp.lt.s32.totalorder %s19, 0
      %s21 = scalar_select %p20, %s19, 0
      %23 = vsyncadd [#allocation4], 0
      %s24 = smul.addr %s21, 8
      %s25 = scalar_lea.hbm %s1, %s24
      %s27 = sshll.u32 %s25, 4
      %s28 = int_to_ptr.hbm [resolvable:$true] %s27
      %s29 = sshll.u32 [#allocation3], 4
      %s30 = int_to_ptr.vmem [resolvable:$true] %s29
      %32 = dma.hbm_to_vmem [thread:$0]  %s28, 128, %s30, [#allocation4]
    $region9: #{tpu_custom_call.1} parent=1 // pred_fallthru
      _
    // Predicated region
    $region10: #{tpu_custom_call.1} parent=1 // pred_check
      _
    $region11: #{tpu_custom_call.1} parent=1 // pred_check_branch
      %34 = sbr.rel (0) target = $region13
    $region12: #{tpu_custom_call.1} parent=1 // pred_region
      %s35 = sadd.s32 0, 0
      %p36 = scmp.lt.s32.totalorder %s35, 0
      %s37 = scalar_select %p36, %s35, 0
      %39 = vsyncadd [#allocation7], 0
      %s40 = smul.addr %s37, 8
      %s41 = scalar_lea.hbm %s2, %s40
      %s43 = sshll.u32 %s41, 4
      %s44 = int_to_ptr.hbm [resolvable:$true] %s43
      %s45 = sshll.u32 [#allocation6], 4
      %s46 = int_to_ptr.vmem [resolvable:$true] %s45
      %48 = dma.hbm_to_vmem [thread:$0]  %s44, 128, %s46, [#allocation7]
    $region13: #{tpu_custom_call.1} parent=1 // pred_fallthru
      _
    // Predicated region
    $region14: #{tpu_custom_call.1} parent=1 // pred_check
      _
    $region15: #{tpu_custom_call.1} parent=1 // pred_check_branch
      %50 = sbr.rel (0) target = $region17
    $region16: #{tpu_custom_call.1} parent=1 // pred_region
      %s51 = sadd.s32 0, 0
      %p52 = scmp.lt.s32.totalorder %s51, 0
      %s53 = scalar_select %p52, %s51, 0
      %55 = vsyncadd [#allocation7], 0
      %s56 = smul.addr %s53, 8
      %s57 = scalar_lea.hbm %s3, %s56
      %s59 = sshll.u32 %s57, 4
      %s60 = int_to_ptr.hbm [resolvable:$true] %s59
      %s61 = sshll.u32 [#allocation8], 4
      %s62 = int_to_ptr.vmem [resolvable:$true] %s61
      %64 = dma.hbm_to_vmem [thread:$0]  %s60, 128, %s62, [#allocation7]
    $region17: #{tpu_custom_call.1} parent=1 // pred_fallthru
      _
    // Predicated region
    $region18: #{tpu_custom_call.1} parent=1 // pred_check
      _
    $region19: #{tpu_custom_call.1} parent=1 // pred_check_branch
      %66 = sbr.rel (0) target = $region21
    $region20: #{tpu_custom_call.1} parent=1 // pred_region
      %s67 = sadd.s32 0, 0
      %p68 = scmp.lt.s32.totalorder %s67, 0
      %s69 = scalar_select %p68, %s67, 0
      %71 = vsyncadd [#allocation10], 0
      %s72 = smul.addr %s69, 8
      %s73 = scalar_lea.hbm %s4, %s72
      %s75 = sshll.u32 %s73, 4
      %s76 = int_to_ptr.hbm [resolvable:$true] %s75
      %s77 = sshll.u32 [#allocation9], 4
      %s78 = int_to_ptr.vmem [resolvable:$true] %s77
      %80 = dma.hbm_to_vmem [thread:$0]  %s76, 128, %s78, [#allocation10]
    $region21: #{tpu_custom_call.1} parent=1 // pred_fallthru
      _
    // Predicated region
    $region22: #{tpu_custom_call.1} parent=1 // pred_check
      _
    $region23: #{tpu_custom_call.1} parent=1 // pred_check_branch
      %82 = sbr.rel (0) target = $region25
    $region24: #{tpu_custom_call.1} parent=1 // pred_region
      %84 = dma.done [#allocation4], 128
    $region25: #{tpu_custom_call.1} parent=1 // pred_fallthru
      _
    // Predicated region
    $region26: #{tpu_custom_call.1} parent=1 // pred_check
      _
    $region27: #{tpu_custom_call.1} parent=1 // pred_check_branch
      %86 = sbr.rel (0) target = $region29
    $region28: #{tpu_custom_call.1} parent=1 // pred_region
      %88 = dma.done [#allocation7], 128
    $region29: #{tpu_custom_call.1} parent=1 // pred_fallthru
      _
    // Predicated region
    $region30: #{tpu_custom_call.1} parent=1 // pred_check
      _
    $region31: #{tpu_custom_call.1} parent=1 // pred_check_branch
      %90 = sbr.rel (0) target = $region33
    $region32: #{tpu_custom_call.1} parent=1 // pred_region
      %92 = dma.done [#allocation7], 128
    $region33: #{tpu_custom_call.1} parent=1 // pred_fallthru
      _
    // Predicated region
    $region34: #{tpu_custom_call.1} parent=1 // pred_check
      _
    $region35: #{tpu_custom_call.1} parent=1 // pred_check_branch
      %94 = sbr.rel (0) target = $region37
    $region36: #{tpu_custom_call.1} parent=1 // pred_region
      %96 = dma.done [#allocation10], 128
    $region37: #{tpu_custom_call.1} parent=1 // pred_fallthru
      _
    %s97 = sadd.s32 0, 0
    %p98 = scmp.lt.s32.totalorder %s97, 0
    %s99 = scalar_select %p98, %s97, 0
    %s100 = sadd.s32 0, 0
    %p101 = scmp.lt.s32.totalorder %s100, 0
    %s102 = scalar_select %p101, %s100, 0
    %s103 = sadd.s32 0, 0
    %p104 = scmp.lt.s32.totalorder %s103, 0
    %s105 = scalar_select %p104, %s103, 0
    %s106 = sadd.s32 0, 0
    %p107 = scmp.lt.s32.totalorder %s106, 0
    %s108 = scalar_select %p107, %s106, 0
    %v109 = vld [vmem:[#allocation3] sm:$0xff]
    %v110 = vld [vmem:[#allocation6] sm:$0xff]
    %v111 = vld [vmem:[#allocation8] sm:$0xff]
    %v112 = vld [vmem:[#allocation9] sm:$0xff]
    %s113 = sld [smem:[#allocation2]]
    %v114 = vadd.f32 %v112, 0.01
    %v115 = vmul.f32 %v114, 0.98039216
    %v116 = vsub.f32 %v111, %v115
    %v117 = vsub.f32 1.0, %v115
    %v118 = vmul.f32 %v115, %v117
    %v119 = vrcp.pop %v118
    %v120 = vmul.f32 %v118, %v119
    %v121 = vsub.f32 1.0, %v120
    %v122 = vmul.f32 %v119, %v121
    %v123 = vadd.f32 %v119, %v122
    %vm124 = vweird.f32 %v118
    %vm125 = vweird.f32 %v119
    %vm126 = vmor %vm124, %vm125
    %v127 = vsel %vm126, %v119, %v123
    %v128 = vand.u32 2147483647, %v118
    %vm129 = vcmp.eq.f32.partialorder %v128, 8.507059e+37
    %v130 = vand.u32 %v118, 2147483648
    %v131 = vor.u32 1.1754944e-38, %v130
    %v132 = vsel %vm129, %v131, %v127
    %v133 = vmul.f32 %v116, %v132
    %v134 = vstv %s113
    %v135 = vmul.f32 %v133, %v134
    %v136 = vadd.f32 %v110, %v135
    %v137 = vsub.f32 %v109, %v136
    %v138 = vmul.f32 %v137, %v137
    %s139 = sadd.s32 0, 0
    %p140 = scmp.eq.s32.totalorder 0, 0
    // Predicated region
    $region38: #{tpu_custom_call.1} parent=1 // pred_check
      %p141 = pneg %p140
    $region39: #{tpu_custom_call.1} parent=1 // pred_check_branch
      %143 = sbr.rel (%p141) target = $region41
    $region40: #{tpu_custom_call.1} parent=1 // pred_region
      %144 = vst [vmem:[#allocation11] sm:$0xff] 0.0
    $region41: #{tpu_custom_call.1} parent=1 // pred_fallthru
      _
    %p145 = scmp.lt.s32.totalorder %s139, 0
    // Predicated region
    $region42: #{tpu_custom_call.1} parent=1 // pred_check
      %p146 = pneg %p145
    $region43: #{tpu_custom_call.1} parent=1 // pred_check_branch
      %148 = sbr.rel (%p146) target = $region45
    $region44: #{tpu_custom_call.1} parent=1 // pred_region
      %v149 = vld [vmem:[#allocation11] sm:$0xff]
      %v150 = vadd.f32 %v138, 0.0
      %v151 = vadd.f32 %v149, %v150
      %152 = vst [vmem:[#allocation11] sm:$0xff] %v151
    $region45: #{tpu_custom_call.1} parent=1 // pred_fallthru
      _
    %p153 = scmp.eq.s32.totalorder %s139, 0
    // Predicated region
    $region46: #{tpu_custom_call.1} parent=1 // pred_check
      %p154 = pneg %p153
    $region47: #{tpu_custom_call.1} parent=1 // pred_check_branch
      %156 = sbr.rel (%p154) target = $region49
    $region48: #{tpu_custom_call.1} parent=1 // pred_region
      %v157 = vlaneseq
      %v158 = vshrl.u32 %v157, 7
      %v159 = vlaneseq
      %v160 = vand.u32 %v159, 127
      %v161 = vmul.u32 %v158, 128
      %v162 = vadd.s32 %v161, %v160
      %vm163 = vcmp.lt.s32.totalorder %v162, 8
      %v164 = vsel %vm163, %v138, 0.0
      %v165 = vld [vmem:[#allocation11] sm:$0xff]
      %v166 = vadd.f32 %v164, 0.0
      %v167 = vadd.f32 %v165, %v166
      %168 = vst [vmem:[#allocation11] sm:$0xff] %v167
    $region49: #{tpu_custom_call.1} parent=1 // pred_fallthru
      _
    // Predicated region
    $region50: #{tpu_custom_call.1} parent=1 // pred_check
      _
    $region51: #{tpu_custom_call.1} parent=1 // pred_check_branch
      %170 = sbr.rel (0) target = $region53
    $region52: #{tpu_custom_call.1} parent=1 // pred_region
      %172 = vsyncadd [#allocation5], 0
      %s174 = sshll.u32 [#allocation11], 4
      %s175 = int_to_ptr.vmem [resolvable:$true] %s174
      %s176 = sshll.u32 %s5, 4
      %s177 = int_to_ptr.hbm [resolvable:$true] %s176
      %179 = dma.vmem_to_hbm [thread:$0]  %s175, 128, %s177, [#allocation5]
    $region53: #{tpu_custom_call.1} parent=1 // pred_fallthru
      _
    // Predicated region
    $region54: #{tpu_custom_call.1} parent=1 // pred_check
      _
    $region55: #{tpu_custom_call.1} parent=1 // pred_check_branch
      %181 = sbr.rel (0) target = $region57
    $region56: #{tpu_custom_call.1} parent=1 // pred_region
      %183 = dma.done [#allocation5], 128
    $region57: #{tpu_custom_call.1} parent=1 // pred_fallthru
      _
    %184 = vsyncpa [#allocation4], 1
    %185 = vsyncpa [#allocation7], 1
    %186 = vsyncpa [#allocation10], 1
    %187 = vsyncpa [#allocation5], 1

</llo_original>
